<compile_context>
chip_gen: v6e
topology: v6e:2x2x1
jax: 0.10.0
libtpu: 0.0.40
codegen_flags: <defaults>
</compile_context>

<pallas_src>
from functools import partial

import jax
import jax.numpy as jnp
from jax.experimental import pallas as pl
from jax.experimental.pallas import tpu as pltpu


def mha_kernel(q_ref, k_ref, v_ref, wq_ref, wk_ref, wv_ref, wo_ref,
               gamma_ref, beta_ref, out_ref, attn_ref, acc_ref):
    h = pl.program_id(2)
    n_head = pl.num_programs(2)

    @pl.when(h == 0)
    def _init():
        acc_ref[...] = jnp.zeros_like(acc_ref)

    q_res = q_ref[0]                          # (tq, d_model)  f32 (residual)
    q = q_res.astype(jnp.bfloat16)
    k = k_ref[0]                              # (lk, d_model)  bf16
    v = v_ref[0]                              # (lk, d_model)  bf16
    wq = wq_ref[0]                            # (d_model, d_k) bf16, pre-scaled by 1/sqrt(d_k)
    wk = wk_ref[0]                            # (d_model, d_k) bf16
    wv = wv_ref[0]                            # (d_model, d_v) bf16
    wo = wo_ref[0]                            # (d_v, d_model) bf16

    # Per-head projections: bf16 operands, f32 MXU accumulation.
    qh = jnp.dot(q, wq, preferred_element_type=jnp.float32)     # (tq, d_k)
    kh = jnp.dot(k, wk, preferred_element_type=jnp.float32)     # (lk, d_k)
    vh = jnp.dot(v, wv, preferred_element_type=jnp.float32)     # (lk, d_v)

    # Scores: contract on the last dims directly (no explicit kh.T transpose).
    scores = jax.lax.dot_general(
        qh.astype(jnp.bfloat16), kh.astype(jnp.bfloat16),
        dimension_numbers=(((1,), (1,)), ((), ())),
        preferred_element_type=jnp.float32)                      # (tq, lk)

    # Numerically stable softmax in f32 (scale already folded into Wq).
    scores = scores - jnp.max(scores, axis=-1, keepdims=True)
    e = jnp.exp(scores)
    attn = e / jnp.sum(e, axis=-1, keepdims=True)
    attn_ref[0, 0] = attn                                        # (tq, lk)

    # Context and output projection, accumulated over heads (replaces concat).
    ctx = jnp.dot(attn.astype(jnp.bfloat16), vh.astype(jnp.bfloat16),
                  preferred_element_type=jnp.float32)            # (tq, d_v)
    acc_ref[...] += jnp.dot(ctx.astype(jnp.bfloat16), wo,
                            preferred_element_type=jnp.float32)  # (tq, d_model)

    @pl.when(h == n_head - 1)
    def _finalize():
        # TODO(synk): nn.Dropout(0.1) omitted — deterministic/eval forward is identity.
        x = acc_ref[...] + q_res                                 # residual (f32)
        mean = jnp.mean(x, axis=-1, keepdims=True)
        var = jnp.mean((x - mean) ** 2, axis=-1, keepdims=True)
        normed = (x - mean) * jax.lax.rsqrt(var + 1e-6)
        out_ref[0] = normed * gamma_ref[...] + beta_ref[...]


def multi_head_attention(q, k, v, wq, wk, wv, wo, gamma, beta,
                         *, n_head, d_k, d_v, tile_q=128):
    """q,k,v: (b, seq, d_model) f32.  wq/wk/wv: (d_model, n_head*d_{k,v}) (pre-transposed
    nn.Linear weights, no bias).  wo: (n_head*d_v, d_model).  gamma/beta: (1, d_model)."""
    b, len_q, d_model = q.shape
    len_k = k.shape[1]

    tq = min(tile_q, len_q)
    assert len_q % tq == 0, "len_q must be divisible by the q tile"
    n_qt = len_q // tq

    # Wrapper-side (plain XLA) weight re-layout: head-major, lane-dense slices,
    # 1/sqrt(d_k) folded into Wq, everything the MXU touches cast to bf16.
    inv_scale = 1.0 / (d_k ** 0.5)
    wq_h = (wq * inv_scale).reshape(d_model, n_head, d_k).transpose(1, 0, 2).astype(jnp.bfloat16)
    wk_h = wk.reshape(d_model, n_head, d_k).transpose(1, 0, 2).astype(jnp.bfloat16)
    wv_h = wv.reshape(d_model, n_head, d_v).transpose(1, 0, 2).astype(jnp.bfloat16)
    wo_h = wo.reshape(n_head, d_v, d_model).astype(jnp.bfloat16)
    k_b = k.astype(jnp.bfloat16)
    v_b = v.astype(jnp.bfloat16)

    grid = (b, n_qt, n_head)   # head axis innermost = reduction ("arbitrary")

    out, attn = pl.pallas_call(
        mha_kernel,
        out_shape=(
            jax.ShapeDtypeStruct((b, len_q, d_model), jnp.float32),
            jax.ShapeDtypeStruct((b, n_head, len_q, len_k), jnp.float32),
        ),
        grid_spec=pltpu.PrefetchScalarGridSpec(
            num_scalar_prefetch=0,
            grid=grid,
            in_specs=[
                pl.BlockSpec((1, tq, d_model), lambda i, j, h: (i, j, 0)),      # q (f32)
                pl.BlockSpec((1, len_k, d_model), lambda i, j, h: (i, 0, 0)),   # k (bf16)
                pl.BlockSpec((1, len_k, d_model), lambda i, j, h: (i, 0, 0)),   # v (bf16)
                pl.BlockSpec((1, d_model, d_k), lambda i, j, h: (h, 0, 0)),     # Wq (scaled)
                pl.BlockSpec((1, d_model, d_k), lambda i, j, h: (h, 0, 0)),     # Wk
                pl.BlockSpec((1, d_model, d_v), lambda i, j, h: (h, 0, 0)),     # Wv
                pl.BlockSpec((1, d_v, d_model), lambda i, j, h: (h, 0, 0)),     # Wo
                pl.BlockSpec((1, d_model), lambda i, j, h: (0, 0)),             # gamma
                pl.BlockSpec((1, d_model), lambda i, j, h: (0, 0)),             # beta
            ],
            out_specs=(
                pl.BlockSpec((1, tq, d_model), lambda i, j, h: (i, j, 0)),      # out (revisited over h)
                pl.BlockSpec((1, 1, tq, len_k), lambda i, j, h: (i, h, j, 0)),  # attn
            ),
            scratch_shapes=[pltpu.VMEM((tq, d_model), jnp.float32)],            # head accumulator
        ),
        compiler_params=pltpu.CompilerParams(
            dimension_semantics=("parallel", "parallel", "arbitrary")),
    )(q, k_b, v_b, wq_h, wk_h, wv_h, wo_h, gamma, beta)
    return out, attn


if __name__ == "__main__":
    # Small shapes consistent with the module: batch=2, seq=8, d_model=32,
    # n_head=4, d_k=d_v=8.
    B, S, D_MODEL = 2, 8, 32
    N_HEAD, D_K, D_V = 4, 8, 8

    key = jax.random.PRNGKey(0)
    kq, kk, kv, kwq, kwk, kwv, kwo = jax.random.split(key, 7)

    q = jax.random.normal(kq, (B, S, D_MODEL), dtype=jnp.float32)
    k = jax.random.normal(kk, (B, S, D_MODEL), dtype=jnp.float32)
    v = jax.random.normal(kv, (B, S, D_MODEL), dtype=jnp.float32)

    scale_in = 1.0 / jnp.sqrt(D_MODEL)
    wq = jax.random.normal(kwq, (D_MODEL, N_HEAD * D_K), dtype=jnp.float32) * scale_in
    wk = jax.random.normal(kwk, (D_MODEL, N_HEAD * D_K), dtype=jnp.float32) * scale_in
    wv = jax.random.normal(kwv, (D_MODEL, N_HEAD * D_K), dtype=jnp.float32) * scale_in
    wo = jax.random.normal(kwo, (N_HEAD * D_V, D_MODEL), dtype=jnp.float32) / jnp.sqrt(
        N_HEAD * D_V)

    gamma = jnp.ones((1, D_MODEL), dtype=jnp.float32)
    beta = jnp.zeros((1, D_MODEL), dtype=jnp.float32)

    out, attn = multi_head_attention(
        q, k, v, wq, wk, wv, wo, gamma, beta,
        n_head=N_HEAD, d_k=D_K, d_v=D_V)
    jax.block_until_ready((out, attn))

    # Pure-JAX reference mirroring the kernel's mixed-precision recipe
    # (bf16 matmul operands, f32 accumulation, f32 softmax / LayerNorm).
    def ref_forward(q, k, v):
        inv = 1.0 / (D_K ** 0.5)
        qb, kb, vb = (t.astype(jnp.bfloat16) for t in (q, k, v))
        wq_b = (wq * inv).astype(jnp.bfloat16)
        wk_b = wk.astype(jnp.bfloat16)
        wv_b = wv.astype(jnp.bfloat16)
        wo_b = wo.astype(jnp.bfloat16)

        qp = jnp.einsum("bsm,mf->bsf", qb, wq_b, preferred_element_type=jnp.float32)
        kp = jnp.einsum("bsm,mf->bsf", kb, wk_b, preferred_element_type=jnp.float32)
        vp = jnp.einsum("bsm,mf->bsf", vb, wv_b, preferred_element_type=jnp.float32)
        qh = qp.reshape(B, S, N_HEAD, D_K).transpose(0, 2, 1, 3)
        kh = kp.reshape(B, S, N_HEAD, D_K).transpose(0, 2, 1, 3)
        vh = vp.reshape(B, S, N_HEAD, D_V).transpose(0, 2, 1, 3)
        scores = jnp.einsum("bhqd,bhkd->bhqk",
                            qh.astype(jnp.bfloat16), kh.astype(jnp.bfloat16),
                            preferred_element_type=jnp.float32)
        a = jax.nn.softmax(scores, axis=-1)
        ctx = jnp.einsum("bhqk,bhkd->bhqd",
                         a.astype(jnp.bfloat16), vh.astype(jnp.bfloat16),
                         preferred_element_type=jnp.float32)
        ctx_flat = ctx.transpose(0, 2, 1, 3).reshape(B, S, N_HEAD * D_V)
        proj = jnp.einsum("bsf,fm->bsm", ctx_flat.astype(jnp.bfloat16), wo_b,
                          preferred_element_type=jnp.float32)
        x = proj + q
        mu = x.mean(-1, keepdims=True)
        var = ((x - mu) ** 2).mean(-1, keepdims=True)
        o = (x - mu) * jax.lax.rsqrt(var + 1e-6) * gamma + beta
        return o, a

    out_r, attn_r = ref_forward(q, k, v)
    assert jnp.allclose(out, out_r, atol=2e-3), (
        f"output mismatch, max abs err {jnp.max(jnp.abs(out - out_r))}")
    assert jnp.allclose(attn, attn_r, atol=2e-3), (
        f"attention mismatch, max abs err {jnp.max(jnp.abs(attn - attn_r))}")

    print("KERNEL_OK")
</pallas_src>

<mosaic_0001>
module attributes {stable_mosaic.version = 11 : i64} {
  func.func @mha_kernel(%arg0: i32, %arg1: i32, %arg2: i32, %arg3: memref<1x8x32xf32, #tpu.memory_space<vmem>>, %arg4: memref<1x8x32xbf16, #tpu.memory_space<vmem>>, %arg5: memref<1x8x32xbf16, #tpu.memory_space<vmem>>, %arg6: memref<1x32x8xbf16, #tpu.memory_space<vmem>>, %arg7: memref<1x32x8xbf16, #tpu.memory_space<vmem>>, %arg8: memref<1x32x8xbf16, #tpu.memory_space<vmem>>, %arg9: memref<1x8x32xbf16, #tpu.memory_space<vmem>>, %arg10: memref<1x32xf32, #tpu.memory_space<vmem>>, %arg11: memref<1x32xf32, #tpu.memory_space<vmem>>, %arg12: memref<1x8x32xf32, #tpu.memory_space<vmem>>, %arg13: memref<1x1x8x8xf32, #tpu.memory_space<vmem>>, %arg14: memref<8x32xf32, #tpu.memory_space<vmem>>) attributes {dimension_semantics = [#tpu.dimension_semantics<parallel>, #tpu.dimension_semantics<parallel>, #tpu.dimension_semantics<arbitrary>], iteration_bounds = array<i64: 2, 1, 4>, scalar_prefetch = 0 : i64, scratch_operands = 1 : i64, tpu.core_type = #tpu.core_type<tc>, window_params = [{transform_indices = @transform_0, window_bounds = array<i64: 1, 8, 32>}, {transform_indices = @transform_1, window_bounds = array<i64: 1, 8, 32>}, {transform_indices = @transform_2, window_bounds = array<i64: 1, 8, 32>}, {transform_indices = @transform_3, window_bounds = array<i64: 1, 32, 8>}, {transform_indices = @transform_4, window_bounds = array<i64: 1, 32, 8>}, {transform_indices = @transform_5, window_bounds = array<i64: 1, 32, 8>}, {transform_indices = @transform_6, window_bounds = array<i64: 1, 8, 32>}, {pipeline_mode = #tpu.pipeline_mode<synchronous>, transform_indices = @transform_7, window_bounds = array<i64: 1, 32>}, {pipeline_mode = #tpu.pipeline_mode<synchronous>, transform_indices = @transform_8, window_bounds = array<i64: 1, 32>}, {transform_indices = @transform_9, window_bounds = array<i64: 1, 8, 32>}, {transform_indices = @transform_10, window_bounds = array<i64: 1, 1, 8, 8>}]} {
    %c0_i32 = arith.constant 0 : i32
    %0 = arith.cmpi eq, %arg2, %c0_i32 : i32
    %1 = arith.extui %0 : i1 to i32
    %c0_i32_0 = arith.constant 0 : i32
    %2 = arith.cmpi ne, %1, %c0_i32_0 : i32
    scf.if %2 {
      %cst_37 = arith.constant 0.000000e+00 : f32
      %47 = vector.broadcast %cst_37 : f32 to vector<8x32xf32>
      %c0_38 = arith.constant 0 : index
      %c0_39 = arith.constant 0 : index
      %48 = vector.load %arg14[%c0_38, %c0_39] : memref<8x32xf32, #tpu.memory_space<vmem>>, vector<8x32xf32>
      tpu.vector_store %arg14[%c0_38, %c0_39], %47 {strides = array<i32>} : memref<8x32xf32, #tpu.memory_space<vmem>>, vector<8x32xf32>,
    } else {
    }
    %c0 = arith.constant 0 : index
    %c0_1 = arith.constant 0 : index
    %c0_2 = arith.constant 0 : index
    %3 = vector.load %arg3[%c0, %c0_1, %c0_2] : memref<1x8x32xf32, #tpu.memory_space<vmem>>, vector<1x8x32xf32>
    %4 = vector.shape_cast %3 : vector<1x8x32xf32> to vector<8x32xf32>
    %5 = arith.truncf %4 : vector<8x32xf32> to vector<8x32xbf16>
    %c0_3 = arith.constant 0 : index
    %c0_4 = arith.constant 0 : index
    %c0_5 = arith.constant 0 : index
    %6 = vector.load %arg4[%c0_3, %c0_4, %c0_5] : memref<1x8x32xbf16, #tpu.memory_space<vmem>>, vector<1x8x32xbf16>
    %7 = vector.shape_cast %6 : vector<1x8x32xbf16> to vector<8x32xbf16>
    %c0_6 = arith.constant 0 : index
    %c0_7 = arith.constant 0 : index
    %c0_8 = arith.constant 0 : index
    %8 = vector.load %arg5[%c0_6, %c0_7, %c0_8] : memref<1x8x32xbf16, #tpu.memory_space<vmem>>, vector<1x8x32xbf16>
    %9 = vector.shape_cast %8 : vector<1x8x32xbf16> to vector<8x32xbf16>
    %c0_9 = arith.constant 0 : index
    %c0_10 = arith.constant 0 : index
    %c0_11 = arith.constant 0 : index
    %10 = vector.load %arg6[%c0_9, %c0_10, %c0_11] : memref<1x32x8xbf16, #tpu.memory_space<vmem>>, vector<1x32x8xbf16>
    %11 = vector.shape_cast %10 : vector<1x32x8xbf16> to vector<32x8xbf16>
    %c0_12 = arith.constant 0 : index
    %c0_13 = arith.constant 0 : index
    %c0_14 = arith.constant 0 : index
    %12 = vector.load %arg7[%c0_12, %c0_13, %c0_14] : memref<1x32x8xbf16, #tpu.memory_space<vmem>>, vector<1x32x8xbf16>
    %13 = vector.shape_cast %12 : vector<1x32x8xbf16> to vector<32x8xbf16>
    %c0_15 = arith.constant 0 : index
    %c0_16 = arith.constant 0 : index
    %c0_17 = arith.constant 0 : index
    %14 = vector.load %arg8[%c0_15, %c0_16, %c0_17] : memref<1x32x8xbf16, #tpu.memory_space<vmem>>, vector<1x32x8xbf16>
    %15 = vector.shape_cast %14 : vector<1x32x8xbf16> to vector<32x8xbf16>
    %c0_18 = arith.constant 0 : index
    %c0_19 = arith.constant 0 : index
    %c0_20 = arith.constant 0 : index
    %16 = vector.load %arg9[%c0_18, %c0_19, %c0_20] : memref<1x8x32xbf16, #tpu.memory_space<vmem>>, vector<1x8x32xbf16>
    %17 = vector.shape_cast %16 : vector<1x8x32xbf16> to vector<8x32xbf16>
    %cst = arith.constant dense<0.000000e+00> : vector<8x8xf32>
    %18 = tpu.matmul %5, %11, %cst {dimension_numbers = #tpu.dot_dimension_numbers<[1], [0], [0], [1], [0, 0, 1, 1], [], []>} : vector<8x32xbf16>, vector<32x8xbf16>, vector<8x8xf32> -> vector<8x8xf32>
    %cst_21 = arith.constant dense<0.000000e+00> : vector<8x8xf32>
    %19 = tpu.matmul %7, %13, %cst_21 {dimension_numbers = #tpu.dot_dimension_numbers<[1], [0], [0], [1], [0, 0, 1, 1], [], []>} : vector<8x32xbf16>, vector<32x8xbf16>, vector<8x8xf32> -> vector<8x8xf32>
    %cst_22 = arith.constant dense<0.000000e+00> : vector<8x8xf32>
    %20 = tpu.matmul %9, %15, %cst_22 {dimension_numbers = #tpu.dot_dimension_numbers<[1], [0], [0], [1], [0, 0, 1, 1], [], []>} : vector<8x32xbf16>, vector<32x8xbf16>, vector<8x8xf32> -> vector<8x8xf32>
    %21 = arith.truncf %18 : vector<8x8xf32> to vector<8x8xbf16>
    %22 = arith.truncf %19 : vector<8x8xf32> to vector<8x8xbf16>
    %cst_23 = arith.constant dense<0.000000e+00> : vector<8x8xf32>
    %23 = tpu.matmul %21, %22, %cst_23 {dimension_numbers = #tpu.dot_dimension_numbers<[1], [1], [0], [0], [0, 0, 1, 0], [], []>} : vector<8x8xbf16>, vector<8x8xbf16>, vector<8x8xf32> -> vector<8x8xf32>
    %cst_24 = arith.constant dense<0xFF800000> : vector<8xf32>
    %24 = vector.multi_reduction <maximumf>, %23, %cst_24 [1] : vector<8x8xf32> to vector<8xf32>
    %25 = vector.shape_cast %24 : vector<8xf32> to vector<8x1xf32>
    %26 = vector.broadcast %25 : vector<8x1xf32> to vector<8x8xf32>
    %27 = arith.subf %23, %26 : vector<8x8xf32>
    %28 = math.exp %27 : vector<8x8xf32>
    %cst_25 = arith.constant dense<0.000000e+00> : vector<8xf32>
    %29 = vector.multi_reduction <add>, %28, %cst_25 [1] : vector<8x8xf32> to vector<8xf32>
    %30 = vector.shape_cast %29 : vector<8xf32> to vector<8x1xf32>
    %31 = vector.broadcast %30 : vector<8x1xf32> to vector<8x8xf32>
    %32 = arith.divf %28, %31 : vector<8x8xf32>
    %c0_26 = arith.constant 0 : index
    %c0_27 = arith.constant 0 : index
    %c0_28 = arith.constant 0 : index
    %c0_29 = arith.constant 0 : index
    %33 = vector.load %arg13[%c0_26, %c0_27, %c0_28, %c0_29] : memref<1x1x8x8xf32, #tpu.memory_space<vmem>>, vector<1x1x8x8xf32>
    %34 = vector.shape_cast %33 : vector<1x1x8x8xf32> to vector<8x8xf32>
    %35 = vector.shape_cast %32 : vector<8x8xf32> to vector<1x1x8x8xf32>
    tpu.vector_store %arg13[%c0_26, %c0_27, %c0_28, %c0_29], %35 {strides = array<i32>} : memref<1x1x8x8xf32, #tpu.memory_space<vmem>>, vector<1x1x8x8xf32>,
    %36 = arith.truncf %32 : vector<8x8xf32> to vector<8x8xbf16>
    %37 = arith.truncf %20 : vector<8x8xf32> to vector<8x8xbf16>
    %cst_30 = arith.constant dense<0.000000e+00> : vector<8x8xf32>
    %38 = tpu.matmul %36, %37, %cst_30 {dimension_numbers = #tpu.dot_dimension_numbers<[1], [0], [0], [1], [0, 0, 1, 1], [], []>} : vector<8x8xbf16>, vector<8x8xbf16>, vector<8x8xf32> -> vector<8x8xf32>
    %c0_31 = arith.constant 0 : index
    %c0_32 = arith.constant 0 : index
    %39 = vector.load %arg14[%c0_31, %c0_32] : memref<8x32xf32, #tpu.memory_space<vmem>>, vector<8x32xf32>
    %40 = arith.truncf %38 : vector<8x8xf32> to vector<8x8xbf16>
    %cst_33 = arith.constant dense<0.000000e+00> : vector<8x32xf32>
    %41 = tpu.matmul %40, %17, %cst_33 {dimension_numbers = #tpu.dot_dimension_numbers<[1], [0], [0], [1], [0, 0, 1, 1], [], []>} : vector<8x8xbf16>, vector<8x32xbf16>, vector<8x32xf32> -> vector<8x32xf32>
    %42 = arith.addf %39, %41 : vector<8x32xf32>
    %c0_34 = arith.constant 0 : index
    %c0_35 = arith.constant 0 : index
    %43 = vector.load %arg14[%c0_34, %c0_35] : memref<8x32xf32, #tpu.memory_space<vmem>>, vector<8x32xf32>
    tpu.vector_store %arg14[%c0_34, %c0_35], %42 {strides = array<i32>} : memref<8x32xf32, #tpu.memory_space<vmem>>, vector<8x32xf32>,
    %c3_i32 = arith.constant 3 : i32
    %44 = arith.cmpi eq, %arg2, %c3_i32 : i32
    %45 = arith.extui %44 : i1 to i32
    %c0_i32_36 = arith.constant 0 : i32
    %46 = arith.cmpi ne, %45, %c0_i32_36 : i32
    scf.if %46 {
      %c0_37 = arith.constant 0 : index
      %c0_38 = arith.constant 0 : index
      %47 = vector.load %arg14[%c0_37, %c0_38] : memref<8x32xf32, #tpu.memory_space<vmem>>, vector<8x32xf32>
      %48 = arith.addf %47, %4 : vector<8x32xf32>
      %cst_39 = arith.constant dense<0.000000e+00> : vector<8xf32>
      %49 = vector.multi_reduction <add>, %48, %cst_39 [1] : vector<8x32xf32> to vector<8xf32>
      %50 = vector.shape_cast %49 : vector<8xf32> to vector<8x1xf32>
      %cst_40 = arith.constant 3.200000e+01 : f32
      %51 = vector.broadcast %cst_40 : f32 to vector<8x1xf32>
      %52 = arith.divf %50, %51 : vector<8x1xf32>
      %53 = vector.broadcast %52 : vector<8x1xf32> to vector<8x32xf32>
      %54 = arith.subf %48, %53 : vector<8x32xf32>
      %55 = arith.mulf %54, %54 : vector<8x32xf32>
      %cst_41 = arith.constant dense<0.000000e+00> : vector<8xf32>
      %56 = vector.multi_reduction <add>, %55, %cst_41 [1] : vector<8x32xf32> to vector<8xf32>
      %57 = vector.shape_cast %56 : vector<8xf32> to vector<8x1xf32>
      %cst_42 = arith.constant 3.200000e+01 : f32
      %58 = vector.broadcast %cst_42 : f32 to vector<8x1xf32>
      %59 = arith.divf %57, %58 : vector<8x1xf32>
      %60 = vector.broadcast %52 : vector<8x1xf32> to vector<8x32xf32>
      %61 = arith.subf %48, %60 : vector<8x32xf32>
      %cst_43 = arith.constant 9.99999997E-7 : f32
      %62 = vector.broadcast %cst_43 : f32 to vector<8x1xf32>
      %63 = arith.addf %59, %62 : vector<8x1xf32>
      %64 = math.rsqrt %63 : vector<8x1xf32>
      %65 = vector.broadcast %64 : vector<8x1xf32> to vector<8x32xf32>
      %66 = arith.mulf %61, %65 : vector<8x32xf32>
      %c0_44 = arith.constant 0 : index
      %c0_45 = arith.constant 0 : index
      %67 = vector.load %arg10[%c0_44, %c0_45] : memref<1x32xf32, #tpu.memory_space<vmem>>, vector<1x32xf32>
      %68 = vector.broadcast %67 : vector<1x32xf32> to vector<8x32xf32>
      %69 = arith.mulf %66, %68 : vector<8x32xf32>
      %c0_46 = arith.constant 0 : index
      %c0_47 = arith.constant 0 : index
      %70 = vector.load %arg11[%c0_46, %c0_47] : memref<1x32xf32, #tpu.memory_space<vmem>>, vector<1x32xf32>
      %71 = vector.broadcast %70 : vector<1x32xf32> to vector<8x32xf32>
      %72 = arith.addf %69, %71 : vector<8x32xf32>
      %c0_48 = arith.constant 0 : index
      %c0_49 = arith.constant 0 : index
      %c0_50 = arith.constant 0 : index
      %73 = vector.load %arg12[%c0_48, %c0_49, %c0_50] : memref<1x8x32xf32, #tpu.memory_space<vmem>>, vector<1x8x32xf32>
      %74 = vector.shape_cast %73 : vector<1x8x32xf32> to vector<8x32xf32>
      %75 = vector.shape_cast %72 : vector<8x32xf32> to vector<1x8x32xf32>
      tpu.vector_store %arg12[%c0_48, %c0_49, %c0_50], %75 {strides = array<i32>} : memref<1x8x32xf32, #tpu.memory_space<vmem>>, vector<1x8x32xf32>,
    } else {
    }
    return
  }
  func.func @transform_0(%arg0: i32, %arg1: i32, %arg2: i32) -> (i32, i32, i32) {
    %c0_i32 = arith.constant 0 : i32
    %c0_i32_0 = arith.constant 0 : i32
    return %arg0, %arg1, %c0_i32 : i32, i32, i32
  }
  func.func @transform_1(%arg0: i32, %arg1: i32, %arg2: i32) -> (i32, i32, i32) {
    %c0_i32 = arith.constant 0 : i32
    %c0_i32_0 = arith.constant 0 : i32
    %c0_i32_1 = arith.constant 0 : i32
    return %arg0, %c0_i32, %c0_i32_0 : i32, i32, i32
  }
  func.func @transform_2(%arg0: i32, %arg1: i32, %arg2: i32) -> (i32, i32, i32) {
    %c0_i32 = arith.constant 0 : i32
    %c0_i32_0 = arith.constant 0 : i32
    %c0_i32_1 = arith.constant 0 : i32
    return %arg0, %c0_i32, %c0_i32_0 : i32, i32, i32
  }
  func.func @transform_3(%arg0: i32, %arg1: i32, %arg2: i32) -> (i32, i32, i32) {
    %c0_i32 = arith.constant 0 : i32
    %c0_i32_0 = arith.constant 0 : i32
    %c0_i32_1 = arith.constant 0 : i32
    return %arg2, %c0_i32, %c0_i32_0 : i32, i32, i32
  }
  func.func @transform_4(%arg0: i32, %arg1: i32, %arg2: i32) -> (i32, i32, i32) {
    %c0_i32 = arith.constant 0 : i32
    %c0_i32_0 = arith.constant 0 : i32
    %c0_i32_1 = arith.constant 0 : i32
    return %arg2, %c0_i32, %c0_i32_0 : i32, i32, i32
  }
  func.func @transform_5(%arg0: i32, %arg1: i32, %arg2: i32) -> (i32, i32, i32) {
    %c0_i32 = arith.constant 0 : i32
    %c0_i32_0 = arith.constant 0 : i32
    %c0_i32_1 = arith.constant 0 : i32
    return %arg2, %c0_i32, %c0_i32_0 : i32, i32, i32
  }
  func.func @transform_6(%arg0: i32, %arg1: i32, %arg2: i32) -> (i32, i32, i32) {
    %c0_i32 = arith.constant 0 : i32
    %c0_i32_0 = arith.constant 0 : i32
    %c0_i32_1 = arith.constant 0 : i32
    return %arg2, %c0_i32, %c0_i32_0 : i32, i32, i32
  }
  func.func @transform_7(%arg0: i32, %arg1: i32, %arg2: i32) -> (i32, i32) {
    %c0_i32 = arith.constant 0 : i32
    %c0_i32_0 = arith.constant 0 : i32
    %c0_i32_1 = arith.constant 0 : i32
    return %c0_i32, %c0_i32_0 : i32, i32
  }
  func.func @transform_8(%arg0: i32, %arg1: i32, %arg2: i32) -> (i32, i32) {
    %c0_i32 = arith.constant 0 : i32
    %c0_i32_0 = arith.constant 0 : i32
    %c0_i32_1 = arith.constant 0 : i32
    return %c0_i32, %c0_i32_0 : i32, i32
  }
  func.func @transform_9(%arg0: i32, %arg1: i32, %arg2: i32) -> (i32, i32, i32) {
    %c0_i32 = arith.constant 0 : i32
    %c0_i32_0 = arith.constant 0 : i32
    return %arg0, %arg1, %c0_i32 : i32, i32, i32
  }
  func.func @transform_10(%arg0: i32, %arg1: i32, %arg2: i32) -> (i32, i32, i32, i32) {
    %c0_i32 = arith.constant 0 : i32
    %c0_i32_0 = arith.constant 0 : i32
    return %arg0, %arg2, %arg1, %c0_i32 : i32, i32, i32, i32
  }
}

</mosaic_0001>

<llo_original>
// kernel: tpu_custom_call.1
$region0: #{tpu_custom_call.1}
  #allocation0 [shape = 'u32[]', space=smem, size = 0x4, offset = 0x4, fixed_abs, tag = 'smem constant byte address 0x4 - core index']
  #allocation1 [shape = 'u32[144,128]{1,0:T(1,128)}', space=vmem, size = 0x12000, scoped, tag = 'internal scratch']
  #allocation2 [shape = 'f32[8,32]{1,0:T(8,128)}', space=vmem, size = 0x1000, scoped, tag = 'scratch operand']
  %s0 = inlined_call_operand.vmem [shape: f32[2,8,32], index: 0, kind: input, shape index: {}]
  %s1 = inlined_call_operand.vmem [shape: bf16[2,8,32], index: 1, kind: input, shape index: {}]
  %s2 = inlined_call_operand.vmem [shape: bf16[2,8,32], index: 2, kind: input, shape index: {}]
  %s3 = inlined_call_operand.vmem [shape: bf16[4,32,8], index: 3, kind: input, shape index: {}]
  %s4 = inlined_call_operand.vmem [shape: bf16[4,32,8], index: 4, kind: input, shape index: {}]
  %s5 = inlined_call_operand.vmem [shape: bf16[4,32,8], index: 5, kind: input, shape index: {}]
  %s6 = inlined_call_operand.vmem [shape: bf16[4,8,32], index: 6, kind: input, shape index: {}]
  %s7 = inlined_call_operand.vmem [shape: f32[1,32], index: 7, kind: input, shape index: {}]
  %s8 = inlined_call_operand.vmem [shape: f32[1,32], index: 8, kind: input, shape index: {}]
  %s9 = inlined_call_operand.hbm [shape: f32[2,8,32], index: 9, kind: output, shape index: {0}]
  %s10 = inlined_call_operand.hbm [shape: f32[2,4,8,8], index: 10, kind: output, shape index: {1}]
  %11 = xla_tuple %s9, %s10
  %s12 = sld [smem:[#allocation0]]
  $region85: #{tpu_custom_call.1} parent=0
    _
  %s14 = ssub.s32 1, %s12
  %s15 = scalar_select 0, %s14, %s12
  $region1: #{tpu_custom_call.1} parent=0
    #allocation3 [shape = 'u8[8192]{0}', space=vmem, size = 0x2000, scoped, tag = 'output window, operand 0']
    #allocation4 [shape = 's32[2]{0}', space=sflag, size = 0x8, scoped, tag = 'scoped memory for tpu_custom_call.1']
    #allocation5 [shape = 'u8[8192]{0}', space=vmem, size = 0x2000, scoped, tag = 'output window, operand 1']
    #allocation6 [shape = 's32[2]{0}', space=sflag, size = 0x8, scoped, tag = 'scoped memory for tpu_custom_call.1']
    %16 = vsyncpa [#allocation4], 0
    %s17 = scalar_lea.sflag [#allocation4], 1
    %18 = vsyncpa %s17, 0
    %19 = vsyncpa [#allocation6], 0
    %s20 = scalar_lea.sflag [#allocation6], 1
    %21 = vsyncpa %s20, 0
    loop: start=0, step=1, limit=10
    $region2: #{tpu_custom_call.1} parent=1 // loop_pre_header
      _
    $region3: #{tpu_custom_call.1} parent=1 // loop_header
      %s23 = sphi 0, %s27
      %p24 = scmp.ge.s32.totalorder %s23, 10
      %s30 = sphi 0, %s49
      %s31 = sphi 0, %s45
      %s32 = sphi 0, %s41
      %s33 = sphi 0, %s30
      %s34 = sphi 0, %s31
      %s35 = sphi 0, %s32
      %s36 = sphi 0, %s33
      %s37 = sphi 0, %s34
      %s38 = sphi 0, %s35
      %s54 = sphi 0, %s56
      %s57 = sphi 0, %s54
      %s58 = sphi 0, %s57
      %s74 = sphi 0, %s58
      %s80 = sphi 0, %s82
      %s83 = sphi 0, %s80
      %s84 = sphi 0, %s83
      %s100 = sphi 0, %s84
      %s106 = sphi 0, %s108
      %s109 = sphi 0, %s106
      %s110 = sphi 0, %s109
      %s126 = sphi 0, %s110
      %s132 = sphi 0, %s134
      %s135 = sphi 0, %s132
      %s136 = sphi 0, %s135
      %s152 = sphi 0, %s136
      %s158 = sphi 0, %s160
      %s161 = sphi 0, %s158
      %s162 = sphi 0, %s161
      %s178 = sphi 0, %s162
      %s184 = sphi 0, %s186
      %s187 = sphi 0, %s184
      %s188 = sphi 0, %s187
      %s204 = sphi 0, %s188
      %s210 = sphi 0, %s212
      %s213 = sphi 0, %s210
      %s214 = sphi 0, %s213
      %s230 = sphi 0, %s214
      %s234 = sphi 0, %s234
      %s236 = sphi 0, %s234
      %s237 = sphi 0, %s236
      %s251 = sphi 0, %s237
      %s255 = sphi 0, %s255
      %s257 = sphi 0, %s255
      %s258 = sphi 0, %s257
      %s272 = sphi 0, %s258
      %s280 = sphi 0, %s282
      %s283 = sphi 0, %s280
      %s284 = sphi 0, %s283
      %s300 = sphi 0, %s284
      %s310 = sphi 0, %s312
      %s313 = sphi 0, %s310
      %s314 = sphi 0, %s313
      %s330 = sphi 0, %s314
    $region4: #{tpu_custom_call.1} parent=1 // loop_header_branch
      %26 = sbr.rel (%p24) target = $region8
    $region5: #{tpu_custom_call.1} parent=1 // loop_body
      %s28 = ssub.s32 %s23, 1
      %s29 = ssub.s32 %s23, 2
      %s39 = sadd.s32 1, %s32
      %p40 = scmp.ge.s32.totalorder %s39, 4
      %s41 = scalar_select %p40, 0, %s39
      %s42 = sadd.s32 1, %s31
      %s43 = scalar_select %p40, %s42, %s31
      %p44 = scmp.ge.s32.totalorder %s43, 1
      %s45 = scalar_select %p44, 0, %s43
      %s46 = sadd.s32 1, %s30
      %s47 = scalar_select %p44, %s46, %s30
      %p48 = scmp.ge.s32.totalorder %s47, 2
      %s49 = scalar_select %p48, 0, %s47
      %s50 = ssub.s32 %s30, %s49
      %s51 = ssub.s32 %s31, %s45
      %s52 = sor.u32 %s50, %s51
      %p53 = scmp.eq.s32.totalorder %s52, 0
      %s55 = sadd.s32 %s54, 1
      %s56 = scalar_select %p53, %s54, %s55
      %p59 = pneg %p53
      %p60 = scmp.eq.s32.totalorder %s23, 7
      %p61 = por %p59, %p60
      %p62 = scmp.ne.s32.totalorder %s54, %s57
      %p63 = scmp.eq.s32.totalorder %s23, 0
      %p64 = por %p62, %p63
      %p65 = scmp.ne.s32.totalorder %s54, %s57
      %p66 = scmp.eq.s32.totalorder %s28, 7
      %p67 = por %p65, %p66
      %p68 = scmp.ne.s32.totalorder %s57, %s58
      %p69 = scmp.eq.s32.totalorder %s28, 0
      %p70 = por %p68, %p69
      %p71 = scmp.ne.s32.totalorder %s57, %s58
      %p72 = scmp.eq.s32.totalorder %s29, 7
      %p73 = por %p71, %p72
      %p75 = scmp.ne.s32.totalorder %s58, %s74
      %p76 = scmp.eq.s32.totalorder %s29, 0
      %p77 = por %p75, %p76
      %s78 = ssub.s32 %s30, %s49
      %p79 = scmp.eq.s32.totalorder %s78, 0
      %s81 = sadd.s32 %s80, 1
      %s82 = scalar_select %p79, %s80, %s81
      %p85 = pneg %p79
      %p86 = scmp.eq.s32.totalorder %s23, 7
      %p87 = por %p85, %p86
      %p88 = scmp.ne.s32.totalorder %s80, %s83
      %p89 = scmp.eq.s32.totalorder %s23, 0
      %p90 = por %p88, %p89
      %p91 = scmp.ne.s32.totalorder %s80, %s83
      %p92 = scmp.eq.s32.totalorder %s28, 7
      %p93 = por %p91, %p92
      %p94 = scmp.ne.s32.totalorder %s83, %s84
      %p95 = scmp.eq.s32.totalorder %s28, 0
      %p96 = por %p94, %p95
      %p97 = scmp.ne.s32.totalorder %s83, %s84
      %p98 = scmp.eq.s32.totalorder %s29, 7
      %p99 = por %p97, %p98
      %p101 = scmp.ne.s32.totalorder %s84, %s100
      %p102 = scmp.eq.s32.totalorder %s29, 0
      %p103 = por %p101, %p102
      %s104 = ssub.s32 %s30, %s49
      %p105 = scmp.eq.s32.totalorder %s104, 0
      %s107 = sadd.s32 %s106, 1
      %s108 = scalar_select %p105, %s106, %s107
      %p111 = pneg %p105
      %p112 = scmp.eq.s32.totalorder %s23, 7
      %p113 = por %p111, %p112
      %p114 = scmp.ne.s32.totalorder %s106, %s109
      %p115 = scmp.eq.s32.totalorder %s23, 0
      %p116 = por %p114, %p115
      %p117 = scmp.ne.s32.totalorder %s106, %s109
      %p118 = scmp.eq.s32.totalorder %s28, 7
      %p119 = por %p117, %p118
      %p120 = scmp.ne.s32.totalorder %s109, %s110
      %p121 = scmp.eq.s32.totalorder %s28, 0
      %p122 = por %p120, %p121
      %p123 = scmp.ne.s32.totalorder %s109, %s110
      %p124 = scmp.eq.s32.totalorder %s29, 7
      %p125 = por %p123, %p124
      %p127 = scmp.ne.s32.totalorder %s110, %s126
      %p128 = scmp.eq.s32.totalorder %s29, 0
      %p129 = por %p127, %p128
      %s130 = ssub.s32 %s32, %s41
      %p131 = scmp.eq.s32.totalorder %s130, 0
      %s133 = sadd.s32 %s132, 1
      %s134 = scalar_select %p131, %s132, %s133
      %p137 = pneg %p131
      %p138 = scmp.eq.s32.totalorder %s23, 7
      %p139 = por %p137, %p138
      %p140 = scmp.ne.s32.totalorder %s132, %s135
      %p141 = scmp.eq.s32.totalorder %s23, 0
      %p142 = por %p140, %p141
      %p143 = scmp.ne.s32.totalorder %s132, %s135
      %p144 = scmp.eq.s32.totalorder %s28, 7
      %p145 = por %p143, %p144
      %p146 = scmp.ne.s32.totalorder %s135, %s136
      %p147 = scmp.eq.s32.totalorder %s28, 0
      %p148 = por %p146, %p147
      %p149 = scmp.ne.s32.totalorder %s135, %s136
      %p150 = scmp.eq.s32.totalorder %s29, 7
      %p151 = por %p149, %p150
      %p153 = scmp.ne.s32.totalorder %s136, %s152
      %p154 = scmp.eq.s32.totalorder %s29, 0
      %p155 = por %p153, %p154
      %s156 = ssub.s32 %s32, %s41
      %p157 = scmp.eq.s32.totalorder %s156, 0
      %s159 = sadd.s32 %s158, 1
      %s160 = scalar_select %p157, %s158, %s159
      %p163 = pneg %p157
      %p164 = scmp.eq.s32.totalorder %s23, 7
      %p165 = por %p163, %p164
      %p166 = scmp.ne.s32.totalorder %s158, %s161
      %p167 = scmp.eq.s32.totalorder %s23, 0
      %p168 = por %p166, %p167
      %p169 = scmp.ne.s32.totalorder %s158, %s161
      %p170 = scmp.eq.s32.totalorder %s28, 7
      %p171 = por %p169, %p170
      %p172 = scmp.ne.s32.totalorder %s161, %s162
      %p173 = scmp.eq.s32.totalorder %s28, 0
      %p174 = por %p172, %p173
      %p175 = scmp.ne.s32.totalorder %s161, %s162
      %p176 = scmp.eq.s32.totalorder %s29, 7
      %p177 = por %p175, %p176
      %p179 = scmp.ne.s32.totalorder %s162, %s178
      %p180 = scmp.eq.s32.totalorder %s29, 0
      %p181 = por %p179, %p180
      %s182 = ssub.s32 %s32, %s41
      %p183 = scmp.eq.s32.totalorder %s182, 0
      %s185 = sadd.s32 %s184, 1
      %s186 = scalar_select %p183, %s184, %s185
      %p189 = pneg %p183
      %p190 = scmp.eq.s32.totalorder %s23, 7
      %p191 = por %p189, %p190
      %p192 = scmp.ne.s32.totalorder %s184, %s187
      %p193 = scmp.eq.s32.totalorder %s23, 0
      %p194 = por %p192, %p193
      %p195 = scmp.ne.s32.totalorder %s184, %s187
      %p196 = scmp.eq.s32.totalorder %s28, 7
      %p197 = por %p195, %p196
      %p198 = scmp.ne.s32.totalorder %s187, %s188
      %p199 = scmp.eq.s32.totalorder %s28, 0
      %p200 = por %p198, %p199
      %p201 = scmp.ne.s32.totalorder %s187, %s188
      %p202 = scmp.eq.s32.totalorder %s29, 7
      %p203 = por %p201, %p202
      %p205 = scmp.ne.s32.totalorder %s188, %s204
      %p206 = scmp.eq.s32.totalorder %s29, 0
      %p207 = por %p205, %p206
      %s208 = ssub.s32 %s32, %s41
      %p209 = scmp.eq.s32.totalorder %s208, 0
      %s211 = sadd.s32 %s210, 1
      %s212 = scalar_select %p209, %s210, %s211
      %p215 = pneg %p209
      %p216 = scmp.eq.s32.totalorder %s23, 7
      %p217 = por %p215, %p216
      %p218 = scmp.ne.s32.totalorder %s210, %s213
      %p219 = scmp.eq.s32.totalorder %s23, 0
      %p220 = por %p218, %p219
      %p221 = scmp.ne.s32.totalorder %s210, %s213
      %p222 = scmp.eq.s32.totalorder %s28, 7
      %p223 = por %p221, %p222
      %p224 = scmp.ne.s32.totalorder %s213, %s214
      %p225 = scmp.eq.s32.totalorder %s28, 0
      %p226 = por %p224, %p225
      %p227 = scmp.ne.s32.totalorder %s213, %s214
      %p228 = scmp.eq.s32.totalorder %s29, 7
      %p229 = por %p227, %p228
      %p231 = scmp.ne.s32.totalorder %s214, %s230
      %p232 = scmp.eq.s32.totalorder %s29, 0
      %p233 = por %p231, %p232
      %s235 = sadd.s32 %s234, 1
      %p238 = scmp.eq.s32.totalorder %s23, 7
      %p239 = scmp.ne.s32.totalorder %s234, %s236
      %p240 = scmp.eq.s32.totalorder %s23, 0
      %p241 = por %p239, %p240
      %p242 = scmp.ne.s32.totalorder %s234, %s236
      %p243 = scmp.eq.s32.totalorder %s28, 7
      %p244 = por %p242, %p243
      %p245 = scmp.ne.s32.totalorder %s236, %s237
      %p246 = scmp.eq.s32.totalorder %s28, 0
      %p247 = por %p245, %p246
      %p248 = scmp.ne.s32.totalorder %s236, %s237
      %p249 = scmp.eq.s32.totalorder %s29, 7
      %p250 = por %p248, %p249
      %p252 = scmp.ne.s32.totalorder %s237, %s251
      %p253 = scmp.eq.s32.totalorder %s29, 0
      %p254 = por %p252, %p253
      %s256 = sadd.s32 %s255, 1
      %p259 = scmp.eq.s32.totalorder %s23, 7
      %p260 = scmp.ne.s32.totalorder %s255, %s257
      %p261 = scmp.eq.s32.totalorder %s23, 0
      %p262 = por %p260, %p261
      %p263 = scmp.ne.s32.totalorder %s255, %s257
      %p264 = scmp.eq.s32.totalorder %s28, 7
      %p265 = por %p263, %p264
      %p266 = scmp.ne.s32.totalorder %s257, %s258
      %p267 = scmp.eq.s32.totalorder %s28, 0
      %p268 = por %p266, %p267
      %p269 = scmp.ne.s32.totalorder %s257, %s258
      %p270 = scmp.eq.s32.totalorder %s29, 7
      %p271 = por %p269, %p270
      %p273 = scmp.ne.s32.totalorder %s258, %s272
      %p274 = scmp.eq.s32.totalorder %s29, 0
      %p275 = por %p273, %p274
      %s276 = ssub.s32 %s30, %s49
      %s277 = ssub.s32 %s31, %s45
      %s278 = sor.u32 %s276, %s277
      %p279 = scmp.eq.s32.totalorder %s278, 0
      %s281 = sadd.s32 %s280, 1
      %s282 = scalar_select %p279, %s280, %s281
      %p285 = pneg %p279
      %p286 = scmp.eq.s32.totalorder %s23, 7
      %p287 = por %p285, %p286
      %p288 = scmp.ne.s32.totalorder %s280, %s283
      %p289 = scmp.eq.s32.totalorder %s23, 0
      %p290 = por %p288, %p289
      %p291 = scmp.ne.s32.totalorder %s280, %s283
      %p292 = scmp.eq.s32.totalorder %s28, 7
      %p293 = por %p291, %p292
      %p294 = scmp.ne.s32.totalorder %s283, %s284
      %p295 = scmp.eq.s32.totalorder %s28, 0
      %p296 = por %p294, %p295
      %p297 = scmp.ne.s32.totalorder %s283, %s284
      %p298 = scmp.eq.s32.totalorder %s29, 7
      %p299 = por %p297, %p298
      %p301 = scmp.ne.s32.totalorder %s284, %s300
      %p302 = scmp.eq.s32.totalorder %s29, 0
      %p303 = por %p301, %p302
      %s304 = ssub.s32 %s30, %s49
      %s305 = ssub.s32 %s32, %s41
      %s306 = sor.u32 %s304, %s305
      %s307 = ssub.s32 %s31, %s45
      %s308 = sor.u32 %s306, %s307
      %p309 = scmp.eq.s32.totalorder %s308, 0
      %s311 = sadd.s32 %s310, 1
      %s312 = scalar_select %p309, %s310, %s311
      %p315 = pneg %p309
      %p316 = scmp.eq.s32.totalorder %s23, 7
      %p317 = por %p315, %p316
      %p318 = scmp.ne.s32.totalorder %s310, %s313
      %p319 = scmp.eq.s32.totalorder %s23, 0
      %p320 = por %p318, %p319
      %p321 = scmp.ne.s32.totalorder %s310, %s313
      %p322 = scmp.eq.s32.totalorder %s28, 7
      %p323 = por %p321, %p322
      %p324 = scmp.ne.s32.totalorder %s313, %s314
      %p325 = scmp.eq.s32.totalorder %s28, 0
      %p326 = por %p324, %p325
      %p327 = scmp.ne.s32.totalorder %s313, %s314
      %p328 = scmp.eq.s32.totalorder %s29, 7
      %p329 = por %p327, %p328
      %p331 = scmp.ne.s32.totalorder %s314, %s330
      %p332 = scmp.eq.s32.totalorder %s29, 0
      %p333 = por %p331, %p332
      %p334 = scmp.le.s32.totalorder 1, %s23
      %p335 = scmp.lt.s32.totalorder %s23, 9
      %p336 = pnand %p334, %p335
      %p337 = pneg %p336
      // Predicated region
      $region9: #{tpu_custom_call.1} parent=5 // pred_check
        _
      $region10: #{tpu_custom_call.1} parent=5 // pred_check_branch
        %339 = sbr.rel (%p336) target = $region12
      $region11: #{tpu_custom_call.1} parent=5 // pred_region
        %s340 = ssub.s32 %s23, 1
        // Predicated region
        $region13: #{tpu_custom_call.1} parent=11 // pred_check
          %p341 = pneg %p247
        $region14: #{tpu_custom_call.1} parent=11 // pred_check_branch
          %343 = sbr.rel (%p341) target = $region16
        $region15: #{tpu_custom_call.1} parent=11 // pred_region
          _
        $region16: #{tpu_custom_call.1} parent=11 // pred_fallthru
          _
        // Predicated region
        $region17: #{tpu_custom_call.1} parent=11 // pred_check
          %p344 = pneg %p268
        $region18: #{tpu_custom_call.1} parent=11 // pred_check_branch
          %346 = sbr.rel (%p344) target = $region20
        $region19: #{tpu_custom_call.1} parent=11 // pred_region
          _
        $region20: #{tpu_custom_call.1} parent=11 // pred_fallthru
          _
      $region12: #{tpu_custom_call.1} parent=5 // pred_fallthru
        _
      %p347 = scmp.lt.s32.totalorder %s23, 8
      // Predicated region
      $region21: #{tpu_custom_call.1} parent=5 // pred_check
        %p348 = pneg %p347
      $region22: #{tpu_custom_call.1} parent=5 // pred_check_branch
        %350 = sbr.rel (%p348) target = $region24
      $region23: #{tpu_custom_call.1} parent=5 // pred_region
        // Predicated region
        $region25: #{tpu_custom_call.1} parent=23 // pred_check
          %p351 = pneg %p64
        $region26: #{tpu_custom_call.1} parent=23 // pred_check_branch
          %353 = sbr.rel (%p351) target = $region28
        $region27: #{tpu_custom_call.1} parent=23 // pred_region
          %p354 = scmp.lt.s32.totalorder %s30, 1
          %s355 = scalar_select %p354, %s30, 1
          %p356 = scmp.lt.s32.totalorder %s31, 0
          %s357 = scalar_select %p356, %s31, 0
          %s358 = sadd.s32 %s357, %s355
          %s359 = smul.addr %s358, 8
          %s360 = scalar_lea.vmem %s0, %s359
        $region28: #{tpu_custom_call.1} parent=23 // pred_fallthru
          _
        // Predicated region
        $region29: #{tpu_custom_call.1} parent=23 // pred_check
          %p361 = pneg %p90
        $region30: #{tpu_custom_call.1} parent=23 // pred_check_branch
          %363 = sbr.rel (%p361) target = $region32
        $region31: #{tpu_custom_call.1} parent=23 // pred_region
          %p364 = scmp.lt.s32.totalorder %s30, 1
          %s365 = scalar_select %p364, %s30, 1
          %s366 = smul.addr %s365, 4
          %s367 = scalar_lea.vmem %s1, %s366
        $region32: #{tpu_custom_call.1} parent=23 // pred_fallthru
          _
        // Predicated region
        $region33: #{tpu_custom_call.1} parent=23 // pred_check
          %p368 = pneg %p116
        $region34: #{tpu_custom_call.1} parent=23 // pred_check_branch
          %370 = sbr.rel (%p368) target = $region36
        $region35: #{tpu_custom_call.1} parent=23 // pred_region
          %p371 = scmp.lt.s32.totalorder %s30, 1
          %s372 = scalar_select %p371, %s30, 1
          %s373 = smul.addr %s372, 4
          %s374 = scalar_lea.vmem %s2, %s373
        $region36: #{tpu_custom_call.1} parent=23 // pred_fallthru
          _
        // Predicated region
        $region37: #{tpu_custom_call.1} parent=23 // pred_check
          %p375 = pneg %p142
        $region38: #{tpu_custom_call.1} parent=23 // pred_check_branch
          %377 = sbr.rel (%p375) target = $region40
        $region39: #{tpu_custom_call.1} parent=23 // pred_region
          %p378 = scmp.lt.s32.totalorder %s32, 3
          %s379 = scalar_select %p378, %s32, 3
          %s380 = smul.addr %s379, 4
          %s381 = smul.addr %s380, 4
          %s382 = scalar_lea.vmem %s3, %s381
        $region40: #{tpu_custom_call.1} parent=23 // pred_fallthru
          _
        // Predicated region
        $region41: #{tpu_custom_call.1} parent=23 // pred_check
          %p383 = pneg %p168
        $region42: #{tpu_custom_call.1} parent=23 // pred_check_branch
          %385 = sbr.rel (%p383) target = $region44
        $region43: #{tpu_custom_call.1} parent=23 // pred_region
          %p386 = scmp.lt.s32.totalorder %s32, 3
          %s387 = scalar_select %p386, %s32, 3
          %s388 = smul.addr %s387, 4
          %s389 = smul.addr %s388, 4
          %s390 = scalar_lea.vmem %s4, %s389
        $region44: #{tpu_custom_call.1} parent=23 // pred_fallthru
          _
        // Predicated region
        $region45: #{tpu_custom_call.1} parent=23 // pred_check
          %p391 = pneg %p194
        $region46: #{tpu_custom_call.1} parent=23 // pred_check_branch
          %393 = sbr.rel (%p391) target = $region48
        $region47: #{tpu_custom_call.1} parent=23 // pred_region
          %p394 = scmp.lt.s32.totalorder %s32, 3
          %s395 = scalar_select %p394, %s32, 3
          %s396 = smul.addr %s395, 4
          %s397 = smul.addr %s396, 4
          %s398 = scalar_lea.vmem %s5, %s397
        $region48: #{tpu_custom_call.1} parent=23 // pred_fallthru
          _
        // Predicated region
        $region49: #{tpu_custom_call.1} parent=23 // pred_check
          %p399 = pneg %p220
        $region50: #{tpu_custom_call.1} parent=23 // pred_check_branch
          %401 = sbr.rel (%p399) target = $region52
        $region51: #{tpu_custom_call.1} parent=23 // pred_region
          %p402 = scmp.lt.s32.totalorder %s32, 3
          %s403 = scalar_select %p402, %s32, 3
          %s404 = smul.addr %s403, 4
          %s405 = scalar_lea.vmem %s6, %s404
        $region52: #{tpu_custom_call.1} parent=23 // pred_fallthru
          _
      $region24: #{tpu_custom_call.1} parent=5 // pred_fallthru
        _
      %p406 = scmp.le.s32.totalorder 1, %s23
      %p407 = scmp.lt.s32.totalorder %s23, 9
      %p408 = pnand %p406, %p407
      %p409 = pneg %p408
      // Predicated region
      $region53: #{tpu_custom_call.1} parent=5 // pred_check
        _
      $region54: #{tpu_custom_call.1} parent=5 // pred_check_branch
        %411 = sbr.rel (%p408) target = $region56
      $region55: #{tpu_custom_call.1} parent=5 // pred_region
        %s412 = ssub.s32 %s23, 1
        %p413 = scmp.lt.s32.totalorder %s33, 1
        %s414 = scalar_select %p413, %s33, 1
        %p415 = scmp.lt.s32.totalorder %s34, 0
        %s416 = scalar_select %p415, %s34, 0
        %s417 = sadd.s32 %s416, %s414
        %s418 = smul.addr %s417, 8
        %s419 = scalar_lea.vmem %s0, %s418
        %p420 = pneg %p70
        %p421 = pneg %p67
        %p422 = scmp.lt.s32.totalorder %s33, 1
        %s423 = scalar_select %p422, %s33, 1
        %s424 = smul.addr %s423, 4
        %s425 = scalar_lea.vmem %s1, %s424
        %p426 = pneg %p96
        %p427 = pneg %p93
        %p428 = scmp.lt.s32.totalorder %s33, 1
        %s429 = scalar_select %p428, %s33, 1
        %s430 = smul.addr %s429, 4
        %s431 = scalar_lea.vmem %s2, %s430
        %p432 = pneg %p122
        %p433 = pneg %p119
        %p434 = scmp.lt.s32.totalorder %s35, 3
        %s435 = scalar_select %p434, %s35, 3
        %s436 = smul.addr %s435, 4
        %s437 = smul.addr %s436, 4
        %s438 = scalar_lea.vmem %s3, %s437
        %p439 = pneg %p148
        %p440 = pneg %p145
        %p441 = scmp.lt.s32.totalorder %s35, 3
        %s442 = scalar_select %p441, %s35, 3
        %s443 = smul.addr %s442, 4
        %s444 = smul.addr %s443, 4
        %s445 = scalar_lea.vmem %s4, %s444
        %p446 = pneg %p174
        %p447 = pneg %p171
        %p448 = scmp.lt.s32.totalorder %s35, 3
        %s449 = scalar_select %p448, %s35, 3
        %s450 = smul.addr %s449, 4
        %s451 = smul.addr %s450, 4
        %s452 = scalar_lea.vmem %s5, %s451
        %p453 = pneg %p200
        %p454 = pneg %p197
        %p455 = scmp.lt.s32.totalorder %s35, 3
        %s456 = scalar_select %p455, %s35, 3
        %s457 = smul.addr %s456, 4
        %s458 = scalar_lea.vmem %s6, %s457
        %p459 = pneg %p226
        %p460 = pneg %p223
        %p461 = pneg %p247
        %p462 = pneg %p244
        %p463 = pneg %p268
        %p464 = pneg %p265
        %p465 = pneg %p296
        %p466 = pneg %p293
        %s467 = sand.u32 %s283, 1
        %s468 = scalar_lea.sflag [#allocation4], %s467
        %s469 = sand.u32 %s283, 1
        %s470 = smul.addr %s469, 8
        %s471 = scalar_lea.vmem [#allocation3], %s470
        %p472 = pneg %p326
        %p473 = pneg %p323
        %s474 = sand.u32 %s313, 1
        %s475 = scalar_lea.sflag [#allocation6], %s474
        %s476 = sand.u32 %s313, 1
        %s477 = smul.addr %s476, 8
        %s478 = scalar_lea.vmem [#allocation5], %s477
        %p479 = scmp.lt.s32.totalorder %s33, 1
        %s480 = scalar_select %p479, %s33, 1
        %p481 = scmp.lt.s32.totalorder %s34, 0
        %s482 = scalar_select %p481, %s34, 0
        %s483 = sadd.s32 %s482, %s480
        %s484 = smul.addr %s483, 8
        %s485 = scalar_lea.vmem %s0, %s484
        %p486 = scmp.lt.s32.totalorder %s33, 1
        %s487 = scalar_select %p486, %s33, 1
        %s488 = smul.addr %s487, 4
        %s489 = scalar_lea.vmem %s1, %s488
        %p490 = scmp.lt.s32.totalorder %s33, 1
        %s491 = scalar_select %p490, %s33, 1
        %s492 = smul.addr %s491, 4
        %s493 = scalar_lea.vmem %s2, %s492
        %p494 = scmp.lt.s32.totalorder %s35, 3
        %s495 = scalar_select %p494, %s35, 3
        %s496 = smul.addr %s495, 4
        %s497 = smul.addr %s496, 4
        %s498 = scalar_lea.vmem %s3, %s497
        %p499 = scmp.lt.s32.totalorder %s35, 3
        %s500 = scalar_select %p499, %s35, 3
        %s501 = smul.addr %s500, 4
        %s502 = smul.addr %s501, 4
        %s503 = scalar_lea.vmem %s4, %s502
        %p504 = scmp.lt.s32.totalorder %s35, 3
        %s505 = scalar_select %p504, %s35, 3
        %s506 = smul.addr %s505, 4
        %s507 = smul.addr %s506, 4
        %s508 = scalar_lea.vmem %s5, %s507
        %p509 = scmp.lt.s32.totalorder %s35, 3
        %s510 = scalar_select %p509, %s35, 3
        %s511 = smul.addr %s510, 4
        %s512 = scalar_lea.vmem %s6, %s511
        %p514 = scmp.eq.s32.totalorder %s35, 0
        // Predicated region
        $region57: #{tpu_custom_call.1} parent=55 // pred_check
          %p515 = pneg %p514
        $region58: #{tpu_custom_call.1} parent=55 // pred_check_branch
          %517 = sbr.rel (%p515) target = $region60
        $region59: #{tpu_custom_call.1} parent=55 // pred_region
          %vm518 = vcmask 261120
          %519 = vst.msk [vmem:[#allocation2] sm:$0xff] %vm518, 0.0
        $region60: #{tpu_custom_call.1} parent=55 // pred_fallthru
          _
        %v520 = vld [vmem:[%s485] sm:$0xff]
        %v521 = vpack.c.bf16 %v520, %v520
        %v522 = vld [vmem:[%s489] sm:$0xf]
        %v523 = vld [vmem:[%s493] sm:$0xf]
        %v524 = vld [vmem:[%s498] sm:$0xf]
        %v525 = vld [vmem:[%s498 + $0x4] sm:$0xf]
        %v526 = vld [vmem:[%s498 + $0x8] sm:$0xf]
        %v527 = vld [vmem:[%s498 + $0xc] sm:$0xf]
        %v528 = vld [vmem:[%s503] sm:$0xf]
        %v529 = vld [vmem:[%s503 + $0x4] sm:$0xf]
        %v530 = vld [vmem:[%s503 + $0x8] sm:$0xf]
        %v531 = vld [vmem:[%s503 + $0xc] sm:$0xf]
        %v532 = vld [vmem:[%s508] sm:$0xf]
        %v533 = vld [vmem:[%s508 + $0x4] sm:$0xf]
        %v534 = vld [vmem:[%s508 + $0x8] sm:$0xf]
        %v535 = vld [vmem:[%s508 + $0xc] sm:$0xf]
        %v536 = vld [vmem:[%s512] sm:$0xf]
        %v541 = vunpack.c.l.b16 %v524
        %v542 = vunpack.c.l.b16 %v525
        %v543 = vunpack.c.l.b16 %v526
        %v544 = vunpack.c.l.b16 %v527
        %v545 = vpack.c.b16 %v542, %v541
        %v546 = vpack.c.b16 %v544, %v543
        %vm549 = vcmask 261120
        %v551 = vsel %vm549, %v521, 0
        %553 = vmatprep.subr.bf16.mxu0 0
        %554 = vmatpush1.bf16.msra.mxu0 0
        %555 = vmatprep.subr.bf16.mxu0 0
        %556 = vmatpush1.bf16.msra.mxu0 0
        %557 = vmatprep.subr.bf16.mxu0 0
        %558 = vmatpush1.bf16.msra.mxu0 0
        %559 = vmatprep.subr.bf16.mxu0 0
        %560 = vmatpush1.bf16.msra.mxu0 0
        %561 = vmatprep.subr.bf16.mxu0 0
        %562 = vmatpush1.bf16.msra.mxu0 0
        %563 = vmatprep.subr.bf16.mxu0 0
        %564 = vmatpush1.bf16.msra.mxu0 0
        %565 = vmatprep.subr.bf16.mxu0 0
        %566 = vmatpush1.bf16.msra.mxu0 %v546
        %567 = vmatprep.subr.bf16.mxu0 0
        %568 = vmatpush1.bf16.msra.mxu0 %v545
        %569 = vmatprep.subr.bf16.mxu0 0
        %570 = vmatpush2.bf16.msra.mxu0 0
        %571 = vmatprep.subr.bf16.mxu0 0
        %572 = vmatpush2.bf16.msra.mxu0 0
        %573 = vmatprep.subr.bf16.mxu0 0
        %574 = vmatpush2.bf16.msra.mxu0 0
        %575 = vmatprep.subr.bf16.mxu0 0
        %576 = vmatpush2.bf16.msra.mxu0 0
        %577 = vmatprep.subr.bf16.mxu0 0
        %578 = vmatpush2.bf16.msra.mxu0 0
        %579 = vmatprep.subr.bf16.mxu0 0
        %580 = vmatpush2.bf16.msra.mxu0 0
        %581 = vmatprep.subr.bf16.mxu0 0
        %582 = vmatpush2.bf16.msra.mxu0 0
        %583 = vmatprep.subr.bf16.mxu0 0
        %584 = vmatpush2.bf16.msra.mxu0 0
        %585 = vmatprep.mubr.bf16.mxu0 0
        %586 = vmatmul.mubr.bf16.gmra.mxu0 %v551
        %v587 = vpop.f32.mrf.mxu0
        %v588 = vadd.f32 0.0, %v587
        %v589 = vpop.f32.mrf.mxu0
        %v590 = vpop.f32.mrf.mxu0
        %v591 = vpop.f32.mrf.mxu0
        %592 = vdwg.mxu0
        %v597 = vunpack.c.l.b16 %v528
        %v598 = vunpack.c.l.b16 %v529
        %v599 = vunpack.c.l.b16 %v530
        %v600 = vunpack.c.l.b16 %v531
        %v601 = vpack.c.b16 %v598, %v597
        %v602 = vpack.c.b16 %v600, %v599
        %v606 = vsel %vm549, %v522, 0
        %608 = vmatprep.subr.bf16.mxu0 0
        %609 = vmatpush1.bf16.msra.mxu0 0
        %610 = vmatprep.subr.bf16.mxu0 0
        %611 = vmatpush1.bf16.msra.mxu0 0
        %612 = vmatprep.subr.bf16.mxu0 0
        %613 = vmatpush1.bf16.msra.mxu0 0
        %614 = vmatprep.subr.bf16.mxu0 0
        %615 = vmatpush1.bf16.msra.mxu0 0
        %616 = vmatprep.subr.bf16.mxu0 0
        %617 = vmatpush1.bf16.msra.mxu0 0
        %618 = vmatprep.subr.bf16.mxu0 0
        %619 = vmatpush1.bf16.msra.mxu0 0
        %620 = vmatprep.subr.bf16.mxu0 0
        %621 = vmatpush1.bf16.msra.mxu0 %v602
        %622 = vmatprep.subr.bf16.mxu0 0
        %623 = vmatpush1.bf16.msra.mxu0 %v601
        %624 = vmatprep.subr.bf16.mxu0 0
        %625 = vmatpush2.bf16.msra.mxu0 0
        %626 = vmatprep.subr.bf16.mxu0 0
        %627 = vmatpush2.bf16.msra.mxu0 0
        %628 = vmatprep.subr.bf16.mxu0 0
        %629 = vmatpush2.bf16.msra.mxu0 0
        %630 = vmatprep.subr.bf16.mxu0 0
        %631 = vmatpush2.bf16.msra.mxu0 0
        %632 = vmatprep.subr.bf16.mxu0 0
        %633 = vmatpush2.bf16.msra.mxu0 0
        %634 = vmatprep.subr.bf16.mxu0 0
        %635 = vmatpush2.bf16.msra.mxu0 0
        %636 = vmatprep.subr.bf16.mxu0 0
        %637 = vmatpush2.bf16.msra.mxu0 0
        %638 = vmatprep.subr.bf16.mxu0 0
        %639 = vmatpush2.bf16.msra.mxu0 0
        %640 = vmatprep.mubr.bf16.mxu0 0
        %641 = vmatmul.mubr.bf16.gmra.mxu0 %v606
        %v642 = vpop.f32.mrf.mxu0
        %v643 = vadd.f32 0.0, %v642
        %v644 = vpop.f32.mrf.mxu0
        %v645 = vpop.f32.mrf.mxu0
        %v646 = vpop.f32.mrf.mxu0
        %647 = vdwg.mxu0
        %v652 = vunpack.c.l.b16 %v532
        %v653 = vunpack.c.l.b16 %v533
        %v654 = vunpack.c.l.b16 %v534
        %v655 = vunpack.c.l.b16 %v535
        %v656 = vpack.c.b16 %v653, %v652
        %v657 = vpack.c.b16 %v655, %v654
        %v661 = vsel %vm549, %v523, 0
        %663 = vmatprep.subr.bf16.mxu0 0
        %664 = vmatpush1.bf16.msra.mxu0 0
        %665 = vmatprep.subr.bf16.mxu0 0
        %666 = vmatpush1.bf16.msra.mxu0 0
        %667 = vmatprep.subr.bf16.mxu0 0
        %668 = vmatpush1.bf16.msra.mxu0 0
        %669 = vmatprep.subr.bf16.mxu0 0
        %670 = vmatpush1.bf16.msra.mxu0 0
        %671 = vmatprep.subr.bf16.mxu0 0
        %672 = vmatpush1.bf16.msra.mxu0 0
        %673 = vmatprep.subr.bf16.mxu0 0
        %674 = vmatpush1.bf16.msra.mxu0 0
        %675 = vmatprep.subr.bf16.mxu0 0
        %676 = vmatpush1.bf16.msra.mxu0 %v657
        %677 = vmatprep.subr.bf16.mxu0 0
        %678 = vmatpush1.bf16.msra.mxu0 %v656
        %679 = vmatprep.subr.bf16.mxu0 0
        %680 = vmatpush2.bf16.msra.mxu0 0
        %681 = vmatprep.subr.bf16.mxu0 0
        %682 = vmatpush2.bf16.msra.mxu0 0
        %683 = vmatprep.subr.bf16.mxu0 0
        %684 = vmatpush2.bf16.msra.mxu0 0
        %685 = vmatprep.subr.bf16.mxu0 0
        %686 = vmatpush2.bf16.msra.mxu0 0
        %687 = vmatprep.subr.bf16.mxu0 0
        %688 = vmatpush2.bf16.msra.mxu0 0
        %689 = vmatprep.subr.bf16.mxu0 0
        %690 = vmatpush2.bf16.msra.mxu0 0
        %691 = vmatprep.subr.bf16.mxu0 0
        %692 = vmatpush2.bf16.msra.mxu0 0
        %693 = vmatprep.subr.bf16.mxu0 0
        %694 = vmatpush2.bf16.msra.mxu0 0
        %695 = vmatprep.mubr.bf16.mxu0 0
        %696 = vmatmul.mubr.bf16.gmra.mxu0 %v661
        %v697 = vpop.f32.mrf.mxu0
        %v698 = vadd.f32 0.0, %v697
        %v699 = vpop.f32.mrf.mxu0
        %v700 = vpop.f32.mrf.mxu0
        %v701 = vpop.f32.mrf.mxu0
        %702 = vdwg.mxu0
        %v703 = vpack.c.bf16 %v588, %v588
        %v704 = vpack.c.bf16 %v643, %v643
        %vm705 = vcmask 64512
        %v707 = vsel %vm705, %v703, 0
        %v710 = vsel %vm705, %v704, 0
        %712 = vmatprep.subr.bf16.mxu0 0
        %713 = vmatpush1.bf16.xpose.msra.mxu0 0
        %714 = vmatprep.subr.bf16.mxu0 0
        %715 = vmatpush1.bf16.xpose.msra.mxu0 0
        %716 = vmatprep.subr.bf16.mxu0 0
        %717 = vmatpush1.bf16.xpose.msra.mxu0 0
        %718 = vmatprep.subr.bf16.mxu0 0
        %719 = vmatpush1.bf16.xpose.msra.mxu0 0
        %720 = vmatprep.subr.bf16.mxu0 0
        %721 = vmatpush1.bf16.xpose.msra.mxu0 0
        %722 = vmatprep.subr.bf16.mxu0 0
        %723 = vmatpush1.bf16.xpose.msra.mxu0 0
        %724 = vmatprep.subr.bf16.mxu0 0
        %725 = vmatpush1.bf16.xpose.msra.mxu0 0
        %726 = vmatprep.subr.bf16.mxu0 0
        %727 = vmatpush1.bf16.xpose.msra.mxu0 %v710
        %728 = vmatprep.subr.bf16.mxu0 0
        %729 = vmatpush2.bf16.xpose.msra.mxu0 0
        %730 = vmatprep.subr.bf16.mxu0 0
        %731 = vmatpush2.bf16.xpose.msra.mxu0 0
        %732 = vmatprep.subr.bf16.mxu0 0
        %733 = vmatpush2.bf16.xpose.msra.mxu0 0
        %734 = vmatprep.subr.bf16.mxu0 0
        %735 = vmatpush2.bf16.xpose.msra.mxu0 0
        %736 = vmatprep.subr.bf16.mxu0 0
        %737 = vmatpush2.bf16.xpose.msra.mxu0 0
        %738 = vmatprep.subr.bf16.mxu0 0
        %739 = vmatpush2.bf16.xpose.msra.mxu0 0
        %740 = vmatprep.subr.bf16.mxu0 0
        %741 = vmatpush2.bf16.xpose.msra.mxu0 0
        %742 = vmatprep.subr.bf16.mxu0 0
        %743 = vmatpush2.bf16.xpose.msra.mxu0 0
        %744 = vmatprep.mubr.bf16.mxu0 0
        %745 = vmatmul.mubr.bf16.gmra.mxu0 %v707
        %v746 = vpop.f32.mrf.mxu0
        %v747 = vadd.f32 0.0, %v746
        %v748 = vpop.f32.mrf.mxu0
        %v749 = vpop.f32.mrf.mxu0
        %v750 = vpop.f32.mrf.mxu0
        %751 = vdwg.mxu0
        %v752 = vsel %vm705, %v747, -inf
        %753 = vmax.xlane.f32.xlu0 %v752
        %v754 = vpop.xlane.xlu0 %753
        %v755 = vsub.f32 %v747, %v754
        %v756 = vmul.f32 %v755, 1.442695
        %v757 = vpow.pop %v756
        %v758 = vsel %vm705, %v757, 0.0
        %759 = vadd.xlane.f32.xlu0 %v758
        %v760 = vpop.xlane.xlu0 %759
        %v761 = vrcp.pop %v760
        %v762 = vmul.f32 %v757, %v761
        %763 = vst.msk [vmem:[%s478] sm:$0xff] %vm705, %v762
        %v764 = vpack.c.bf16 %v762, %v762
        %v765 = vpack.c.bf16 %v698, %v698
        %v767 = vsel %vm705, %v764, 0
        %vm769 = vcmask 1043456
        %v771 = vsel %vm769, %v765, 0
        %773 = vmatprep.subr.bf16.mxu0 0
        %774 = vmatpush1.bf16.msra.mxu0 0
        %775 = vmatprep.subr.bf16.mxu0 0
        %776 = vmatpush1.bf16.msra.mxu0 0
        %777 = vmatprep.subr.bf16.mxu0 0
        %778 = vmatpush1.bf16.msra.mxu0 0
        %779 = vmatprep.subr.bf16.mxu0 0
        %780 = vmatpush1.bf16.msra.mxu0 0
        %781 = vmatprep.subr.bf16.mxu0 0
        %782 = vmatpush1.bf16.msra.mxu0 0
        %783 = vmatprep.subr.bf16.mxu0 0
        %784 = vmatpush1.bf16.msra.mxu0 0
        %785 = vmatprep.subr.bf16.mxu0 0
        %786 = vmatpush1.bf16.msra.mxu0 0
        %787 = vmatprep.subr.bf16.mxu0 0
        %788 = vmatpush1.bf16.msra.mxu0 %v771
        %789 = vmatprep.subr.bf16.mxu0 0
        %790 = vmatpush2.bf16.msra.mxu0 0
        %791 = vmatprep.subr.bf16.mxu0 0
        %792 = vmatpush2.bf16.msra.mxu0 0
        %793 = vmatprep.subr.bf16.mxu0 0
        %794 = vmatpush2.bf16.msra.mxu0 0
        %795 = vmatprep.subr.bf16.mxu0 0
        %796 = vmatpush2.bf16.msra.mxu0 0
        %797 = vmatprep.subr.bf16.mxu0 0
        %798 = vmatpush2.bf16.msra.mxu0 0
        %799 = vmatprep.subr.bf16.mxu0 0
        %800 = vmatpush2.bf16.msra.mxu0 0
        %801 = vmatprep.subr.bf16.mxu0 0
        %802 = vmatpush2.bf16.msra.mxu0 0
        %803 = vmatprep.subr.bf16.mxu0 0
        %804 = vmatpush2.bf16.msra.mxu0 0
        %805 = vmatprep.mubr.bf16.mxu0 0
        %806 = vmatmul.mubr.bf16.gmra.mxu0 %v767
        %v807 = vpop.f32.mrf.mxu0
        %v808 = vadd.f32 0.0, %v807
        %v809 = vpop.f32.mrf.mxu0
        %v810 = vpop.f32.mrf.mxu0
        %v811 = vpop.f32.mrf.mxu0
        %812 = vdwg.mxu0
        %v813 = vld [vmem:[#allocation2] sm:$0xff]
        %v814 = vpack.c.bf16 %v808, %v808
        %v816 = vsel %vm705, %v814, 0
        %v819 = vsel %vm769, %v536, 0
        %821 = vmatprep.subr.bf16.mxu0 0
        %822 = vmatpush1.bf16.msra.mxu0 0
        %823 = vmatprep.subr.bf16.mxu0 0
        %824 = vmatpush1.bf16.msra.mxu0 0
        %825 = vmatprep.subr.bf16.mxu0 0
        %826 = vmatpush1.bf16.msra.mxu0 0
        %827 = vmatprep.subr.bf16.mxu0 0
        %828 = vmatpush1.bf16.msra.mxu0 0
        %829 = vmatprep.subr.bf16.mxu0 0
        %830 = vmatpush1.bf16.msra.mxu0 0
        %831 = vmatprep.subr.bf16.mxu0 0
        %832 = vmatpush1.bf16.msra.mxu0 0
        %833 = vmatprep.subr.bf16.mxu0 0
        %834 = vmatpush1.bf16.msra.mxu0 0
        %835 = vmatprep.subr.bf16.mxu0 0
        %836 = vmatpush1.bf16.msra.mxu0 %v819
        %837 = vmatprep.subr.bf16.mxu0 0
        %838 = vmatpush2.bf16.msra.mxu0 0
        %839 = vmatprep.subr.bf16.mxu0 0
        %840 = vmatpush2.bf16.msra.mxu0 0
        %841 = vmatprep.subr.bf16.mxu0 0
        %842 = vmatpush2.bf16.msra.mxu0 0
        %843 = vmatprep.subr.bf16.mxu0 0
        %844 = vmatpush2.bf16.msra.mxu0 0
        %845 = vmatprep.subr.bf16.mxu0 0
        %846 = vmatpush2.bf16.msra.mxu0 0
        %847 = vmatprep.subr.bf16.mxu0 0
        %848 = vmatpush2.bf16.msra.mxu0 0
        %849 = vmatprep.subr.bf16.mxu0 0
        %850 = vmatpush2.bf16.msra.mxu0 0
        %851 = vmatprep.subr.bf16.mxu0 0
        %852 = vmatpush2.bf16.msra.mxu0 0
        %853 = vmatprep.mubr.bf16.mxu0 0
        %854 = vmatmul.mubr.bf16.gmra.mxu0 %v816
        %v855 = vpop.f32.mrf.mxu0
        %v856 = vadd.f32 0.0, %v855
        %v857 = vpop.f32.mrf.mxu0
        %v858 = vpop.f32.mrf.mxu0
        %v859 = vpop.f32.mrf.mxu0
        %860 = vdwg.mxu0
        %v861 = vadd.f32 %v813, %v856
        %862 = vst.msk [vmem:[#allocation2] sm:$0xff] %vm549, %v861
        %p863 = scmp.eq.s32.totalorder %s35, 3
        // Predicated region
        $region61: #{tpu_custom_call.1} parent=55 // pred_check
          %p864 = pneg %p863
        $region62: #{tpu_custom_call.1} parent=55 // pred_check_branch
          %866 = sbr.rel (%p864) target = $region64
        $region63: #{tpu_custom_call.1} parent=55 // pred_region
          %v867 = vld [vmem:[#allocation2] sm:$0xff]
          %v868 = vadd.f32 %v867, %v520
          %v869 = vsel %vm549, %v868, 0.0
          %870 = vadd.xlane.f32.xlu0 %v869
          %v871 = vpop.xlane.xlu0 %870
          %v872 = vrcp.pop 32.0
          %v873 = vmul.f32 %v871, %v872
          %v874 = vsub.f32 %v868, %v873
          %v875 = vmul.f32 %v874, %v874
          %v876 = vsel %vm549, %v875, 0.0
          %877 = vadd.xlane.f32.xlu0 %v876
          %v878 = vpop.xlane.xlu0 %877
          %v879 = vmul.f32 %v878, %v872
          %v880 = vadd.f32 %v879, 1e-06
          %v881 = vrsqrt.pop %v880
          %v882 = vmul.f32 %v874, %v881
          %v883 = vld [vmem:[%s7] sm:$0x1]
          %v885 = vlaneseq
          %v886 = vshrl.u32 %v885, 7
          %v887 = vsub.s32 0, %v886
          %v888 = vrot.slane %v883, %v887
          %v890 = vmul.f32 %v882, %v888
          %v891 = vld [vmem:[%s8] sm:$0x1]
          %v893 = vlaneseq
          %v894 = vshrl.u32 %v893, 7
          %v895 = vsub.s32 0, %v894
          %v896 = vrot.slane %v891, %v895
          %v898 = vadd.f32 %v890, %v896
          %899 = vst.msk [vmem:[%s471] sm:$0xff] %vm549, %v898
        $region64: #{tpu_custom_call.1} parent=55 // pred_fallthru
          _
        %s900 = sand.u32 %s283, 1
        %s901 = scalar_lea.sflag [#allocation4], %s900
        %s902 = sand.u32 %s283, 1
        %s903 = smul.addr %s902, 8
        %s904 = scalar_lea.vmem [#allocation3], %s903
        %s905 = sand.u32 %s313, 1
        %s906 = scalar_lea.sflag [#allocation6], %s905
        %s907 = sand.u32 %s313, 1
        %s908 = smul.addr %s907, 8
        %s909 = scalar_lea.vmem [#allocation5], %s908
        // Predicated region
        $region65: #{tpu_custom_call.1} parent=55 // pred_check
          %p910 = pneg %p293
        $region66: #{tpu_custom_call.1} parent=55 // pred_check_branch
          %912 = sbr.rel (%p910) target = $region68
        $region67: #{tpu_custom_call.1} parent=55 // pred_region
          %s914 = ssub.s32 128, 128
          %915 = vsyncadd %s901, %s914
          %s916 = sadd.s32 %s34, %s33
          %s917 = smul.addr %s916, 128
          %s918 = scalar_lea.hbm %s9, %s917
          %s920 = sshll.u32 %s904, 4
          %s921 = int_to_ptr.vmem [resolvable:$true] %s920
          %923 = dma.vmem_to_hbm [thread:$0]  %s921, 128, %s918, %s901
        $region68: #{tpu_custom_call.1} parent=55 // pred_fallthru
          _
        // Predicated region
        $region69: #{tpu_custom_call.1} parent=55 // pred_check
          %p924 = pneg %p323
        $region70: #{tpu_custom_call.1} parent=55 // pred_check_branch
          %926 = sbr.rel (%p924) target = $region72
        $region71: #{tpu_custom_call.1} parent=55 // pred_region
          %s928 = ssub.s32 128, 128
          %929 = vsyncadd %s906, %s928
          %s930 = sadd.s32 %s34, %s35
          %s931 = smul.addr %s33, 4
          %s932 = sadd.s32 %s930, %s931
          %s933 = smul.addr %s932, 128
          %s934 = scalar_lea.hbm %s10, %s933
          %s936 = sshll.u32 %s909, 4
          %s937 = int_to_ptr.vmem [resolvable:$true] %s936
          %939 = dma.vmem_to_hbm [thread:$0]  %s937, 128, %s934, %s906
        $region72: #{tpu_custom_call.1} parent=55 // pred_fallthru
          _
      $region56: #{tpu_custom_call.1} parent=5 // pred_fallthru
        _
      %p940 = scmp.le.s32.totalorder 2, %s23
      // Predicated region
      $region73: #{tpu_custom_call.1} parent=5 // pred_check
        %p941 = pneg %p940
      $region74: #{tpu_custom_call.1} parent=5 // pred_check_branch
        %943 = sbr.rel (%p941) target = $region76
      $region75: #{tpu_custom_call.1} parent=5 // pred_region
        %s944 = ssub.s32 %s23, 2
        // Predicated region
        $region77: #{tpu_custom_call.1} parent=75 // pred_check
          %p945 = pneg %p299
        $region78: #{tpu_custom_call.1} parent=75 // pred_check_branch
          %947 = sbr.rel (%p945) target = $region80
        $region79: #{tpu_custom_call.1} parent=75 // pred_region
          %s948 = sand.u32 %s284, 1
          %s949 = scalar_lea.sflag [#allocation4], %s948
          %s950 = sand.u32 %s284, 1
          %s951 = smul.addr %s950, 8
          %s952 = scalar_lea.vmem [#allocation3], %s951
          %953 = dma.done %s949, 128
        $region80: #{tpu_custom_call.1} parent=75 // pred_fallthru
          _
        // Predicated region
        $region81: #{tpu_custom_call.1} parent=75 // pred_check
          %p954 = pneg %p329
        $region82: #{tpu_custom_call.1} parent=75 // pred_check_branch
          %956 = sbr.rel (%p954) target = $region84
        $region83: #{tpu_custom_call.1} parent=75 // pred_region
          %s957 = sand.u32 %s314, 1
          %s958 = scalar_lea.sflag [#allocation6], %s957
          %s959 = sand.u32 %s314, 1
          %s960 = smul.addr %s959, 8
          %s961 = scalar_lea.vmem [#allocation5], %s960
          %962 = dma.done %s958, 128
        $region84: #{tpu_custom_call.1} parent=75 // pred_fallthru
          _
      $region76: #{tpu_custom_call.1} parent=5 // pred_fallthru
        _
    $region6: #{tpu_custom_call.1} parent=1 // loop_footer
      %s27 = sadd.s32 1, %s23
    $region7: #{tpu_custom_call.1} parent=1 // loop_footer_branch
      %22 = sbr.rel target = $region3
    $region8: #{tpu_custom_call.1} parent=1 // loop_exit
      _
    %963 = vsyncpa [#allocation4], 1
    %s964 = scalar_lea.sflag [#allocation4], 1
    %965 = vsyncpa %s964, 1
    %966 = vsyncpa [#allocation6], 1
    %s967 = scalar_lea.sflag [#allocation6], 1
    %968 = vsyncpa %s967, 1

</llo_original>
